<compile_context>
chip_gen: v6e
topology: v6e:2x2x1
jax: 0.10.0
libtpu: 0.0.40
codegen_flags: <defaults>
</compile_context>

<pallas_src>
import jax
import jax.numpy as jnp
from jax.experimental import pallas as pl
from jax.experimental.pallas import tpu as pltpu

LANES = 128                 # vreg lane width
SUBLANES = 8                # f32 sublane tiling
DEFAULT_TILE_ROWS = 4096    # (4096, 128) f32 tile = 2 MiB per buffer
SMALL_BATCH_THRESHOLD = 1 << 16  # below this, plain XLA is faster than a launch


def _round_up(n: int, m: int) -> int:
    return ((n + m - 1) // m) * m


def _scale_bias_kernel(params_ref, x_ref, o_ref):
    # params_ref: SMEM (2,) float32 holding [w, b]; x_ref / o_ref: (tile_r, 128) VMEM.
    w = params_ref[0].astype(o_ref.dtype)
    b = params_ref[1].astype(o_ref.dtype)
    o_ref[...] = x_ref[...] * w + b


def simple_stock_model_forward(x, weight, bias, *,
                               tile_rows=DEFAULT_TILE_ROWS,
                               small_batch_threshold=SMALL_BATCH_THRESHOLD,
                               force_kernel=False):
    """nn.Linear(1,1) forward: x (B,1), weight (1,1), bias (1,) -> (B,1)."""
    B, F = x.shape
    assert F == 1 and weight.shape == (1, 1) and bias.shape == (1,)

    w = weight.reshape(())
    b = bias.reshape(())

    rows = B // LANES
    main = rows * LANES

    # Small-batch fast path: launch + per-step overhead dominates tiny batches.
    if (not force_kernel and B < small_batch_threshold) or rows == 0:
        return (x * w + b).astype(x.dtype)

    # Parameters live as float32 scalars in SMEM (cast in-kernel if needed).
    params = jnp.stack([w, b]).astype(jnp.float32)

    x_flat = x.reshape((B,))
    if main == B:
        x_main = x_flat.reshape((rows, LANES))          # zero-copy reshape
    else:
        x_main = x_flat[:main].reshape((rows, LANES))   # <=127-elem tail split off

    # Tile rows: biggest requested tile, clamped to the (sublane-rounded) row
    # count; no padding of rows to a tile multiple -- Pallas handles the
    # ragged trailing block.
    tile_r = min(tile_rows, _round_up(rows, SUBLANES))
    grid = (pl.cdiv(rows, tile_r),)

    n_elems = rows * LANES
    out2d = pl.pallas_call(
        _scale_bias_kernel,
        out_shape=jax.ShapeDtypeStruct((rows, LANES), x.dtype),
        grid=grid,
        in_specs=[
            pl.BlockSpec(memory_space=pltpu.MemorySpace.SMEM),   # [w, b]
            pl.BlockSpec((tile_r, LANES), lambda i: (i, 0)),     # x tile
        ],
        out_specs=pl.BlockSpec((tile_r, LANES), lambda i: (i, 0)),
        compiler_params=pltpu.CompilerParams(
            dimension_semantics=("parallel",)),
        cost_estimate=pl.CostEstimate(
            flops=2 * n_elems,
            transcendentals=0,
            bytes_accessed=2 * n_elems * x.dtype.itemsize),
    )(params, x_main)

    out_main = out2d.reshape((main, 1))
    if main == B:
        return out_main

    # Tail (< 128 elements): plain XLA mul-add, then stitch.
    tail = (x_flat[main:].reshape((B - main, 1)) * w + b).astype(out_main.dtype)
    return jnp.concatenate([out_main, tail], axis=0)


if __name__ == "__main__":
    key = jax.random.PRNGKey(0)
    kx, kw, kb = jax.random.split(key, 3)

    weight = jax.random.normal(kw, (1, 1), dtype=jnp.float32)  # fc1.weight
    bias = jax.random.normal(kb, (1,), dtype=jnp.float32)      # fc1.bias

    def ref(x):
        return x @ weight.T + bias

    # 1) Kernel path, zero-copy case (B multiple of 128).
    x1 = jax.random.normal(kx, (256, 1), dtype=jnp.float32)
    out1 = jax.block_until_ready(
        simple_stock_model_forward(x1, weight, bias, force_kernel=True))
    assert out1.shape == (256, 1)
    assert jnp.allclose(out1, ref(x1), atol=1e-6, rtol=1e-6)

    # 2) Kernel path, ragged case (B not a multiple of 128 -> prefix + XLA tail).
    x2 = jax.random.normal(kx, (300, 1), dtype=jnp.float32)
    out2 = jax.block_until_ready(
        simple_stock_model_forward(x2, weight, bias, force_kernel=True))
    assert out2.shape == (300, 1)
    assert jnp.allclose(out2, ref(x2), atol=1e-6, rtol=1e-6)

    # 3) Small-batch fast path (matches the nn.Module's typical tiny input).
    x3 = jax.random.normal(kx, (8, 1), dtype=jnp.float32)
    out3 = jax.block_until_ready(simple_stock_model_forward(x3, weight, bias))
    assert out3.shape == (8, 1)
    assert jnp.allclose(out3, ref(x3), atol=1e-6, rtol=1e-6)

    print("KERNEL_OK")
</pallas_src>

<mosaic_0001>
module attributes {stable_mosaic.version = 11 : i64} {
  func.func @_scale_bias_kernel(%arg0: i32, %arg1: memref<2xf32, #tpu.memory_space<smem>>, %arg2: memref<8x128xf32, #tpu.memory_space<vmem>>, %arg3: memref<8x128xf32, #tpu.memory_space<vmem>>) attributes {dimension_semantics = [#tpu.dimension_semantics<parallel>], iteration_bounds = array<i64: 1>, scalar_prefetch = 0 : i64, scratch_operands = 0 : i64, tpu.core_type = #tpu.core_type<tc>, window_params = [{transform_indices = @transform_0, window_bounds = array<i64: 2>}, {transform_indices = @transform_1, window_bounds = array<i64: 8, 128>}, {transform_indices = @transform_2, window_bounds = array<i64: 8, 128>}]} {
    %c0 = arith.constant 0 : index
    %0 = memref.load %arg1[%c0] : memref<2xf32, #tpu.memory_space<smem>>
    %c1 = arith.constant 1 : index
    %1 = memref.load %arg1[%c1] : memref<2xf32, #tpu.memory_space<smem>>
    %c0_0 = arith.constant 0 : index
    %c0_1 = arith.constant 0 : index
    %2 = vector.load %arg2[%c0_0, %c0_1] : memref<8x128xf32, #tpu.memory_space<vmem>>, vector<8x128xf32>
    %3 = vector.broadcast %0 : f32 to vector<8x128xf32>
    %4 = arith.mulf %2, %3 : vector<8x128xf32>
    %5 = vector.broadcast %1 : f32 to vector<8x128xf32>
    %6 = arith.addf %4, %5 : vector<8x128xf32>
    %c0_2 = arith.constant 0 : index
    %c0_3 = arith.constant 0 : index
    %7 = vector.load %arg3[%c0_2, %c0_3] : memref<8x128xf32, #tpu.memory_space<vmem>>, vector<8x128xf32>
    tpu.vector_store %arg3[%c0_2, %c0_3], %6 {strides = array<i32>} : memref<8x128xf32, #tpu.memory_space<vmem>>, vector<8x128xf32>,
    return
  }
  func.func @transform_0(%arg0: i32) -> i32 {
    %c0_i32 = arith.constant 0 : i32
    %c0_i32_0 = arith.constant 0 : i32
    return %c0_i32 : i32
  }
  func.func @transform_1(%arg0: i32) -> (i32, i32) {
    %c0_i32 = arith.constant 0 : i32
    %c0_i32_0 = arith.constant 0 : i32
    return %arg0, %c0_i32 : i32, i32
  }
  func.func @transform_2(%arg0: i32) -> (i32, i32) {
    %c0_i32 = arith.constant 0 : i32
    %c0_i32_0 = arith.constant 0 : i32
    return %arg0, %c0_i32 : i32, i32
  }
}

</mosaic_0001>

<llo_original>
// kernel: tpu_custom_call.1
$region0: #{tpu_custom_call.1}
  #allocation0 [shape = 'u32[]', space=smem, size = 0x4, offset = 0x4, fixed_abs, tag = 'smem constant byte address 0x4 - core index']
  #allocation1 [shape = 'u32[144,128]{1,0:T(1,128)}', space=vmem, size = 0x12000, scoped, tag = 'internal scratch']
  %s0 = inlined_call_operand.hbm [shape: f32[2], index: 0, kind: input, shape index: {}]
  %s1 = inlined_call_operand.hbm [shape: f32[2,128], index: 1, kind: input, shape index: {}]
  %s2 = inlined_call_operand.hbm [shape: f32[2,128], index: 2, kind: output, shape index: {}]
  %s3 = sld [smem:[#allocation0]]
  $region26: #{tpu_custom_call.1} parent=0
    _
  %s5 = ssub.s32 1, %s3
  %s6 = scalar_select 0, %s5, %s3
  $region1: #{tpu_custom_call.1} parent=0
    #allocation2 [shape = 'u8[512]{0}', space=smem, size = 0x200, scoped, tag = 'input window, operand 0, single buffered']
    #allocation3 [shape = 's32[1]{0}', space=sflag, size = 0x4, scoped, tag = 'scoped memory for tpu_custom_call.1']
    #allocation4 [shape = 's32[1]{0}', space=sflag, size = 0x4, scoped, tag = 'scoped memory for tpu_custom_call.1']
    #allocation5 [shape = 's32[1]{0}', space=sflag, size = 0x4, scoped, tag = 'scoped memory for tpu_custom_call.1']
    #allocation6 [shape = 'u8[4096]{0}', space=vmem, size = 0x1000, scoped, tag = 'input window, operand 1, single buffered']
    #allocation7 [shape = 'u8[4096]{0}', space=vmem, size = 0x1000, scoped, tag = 'output window, operand 0, single buffered']
    %7 = vsyncpa [#allocation5], 0
    %8 = vsyncpa [#allocation3], 0
    %9 = vsyncpa [#allocation4], 0
    // Predicated region
    $region2: #{tpu_custom_call.1} parent=1 // pred_check
      _
    $region3: #{tpu_custom_call.1} parent=1 // pred_check_branch
      %11 = sbr.rel (0) target = $region5
    $region4: #{tpu_custom_call.1} parent=1 // pred_region
      %s13 = ssub.s32 16, 16
      %14 = vsyncadd [#allocation5], %s13
      %17 = dma.hbm_to_smem %s0, 16, [#allocation2], [#allocation5]
    $region5: #{tpu_custom_call.1} parent=1 // pred_fallthru
      _
    // Predicated region
    $region6: #{tpu_custom_call.1} parent=1 // pred_check
      _
    $region7: #{tpu_custom_call.1} parent=1 // pred_check_branch
      %19 = sbr.rel (0) target = $region9
    $region8: #{tpu_custom_call.1} parent=1 // pred_region
      %s21 = ssub.s32 128, 32
      %22 = vsyncadd [#allocation3], %s21
      %s23 = sshll.u32 [#allocation6], 4
      %s24 = int_to_ptr.vmem [resolvable:$true] %s23
      %29 = dma.hbm_to_vmem [thread:$0]  %s1, 32, %s24, [#allocation3], 32, 32, 2
    $region9: #{tpu_custom_call.1} parent=1 // pred_fallthru
      _
    // Predicated region
    $region10: #{tpu_custom_call.1} parent=1 // pred_check
      _
    $region11: #{tpu_custom_call.1} parent=1 // pred_check_branch
      %31 = sbr.rel (0) target = $region13
    $region12: #{tpu_custom_call.1} parent=1 // pred_region
      %32 = dma.done [#allocation5], 16
    $region13: #{tpu_custom_call.1} parent=1 // pred_fallthru
      _
    // Predicated region
    $region14: #{tpu_custom_call.1} parent=1 // pred_check
      _
    $region15: #{tpu_custom_call.1} parent=1 // pred_check_branch
      %34 = sbr.rel (0) target = $region17
    $region16: #{tpu_custom_call.1} parent=1 // pred_region
      %35 = dma.done [#allocation3], 128
    $region17: #{tpu_custom_call.1} parent=1 // pred_fallthru
      _
    %36 = sfence
    %s37 = sld [smem:[#allocation2]]
    %s38 = sld [smem:[#allocation2 + $0x1]]
    %v39 = vld [vmem:[#allocation6] sm:$0xff]
    %v40 = vstv %s37
    %v41 = vmul.f32 %v39, %v40
    %v42 = vstv %s38
    %v43 = vadd.f32 %v41, %v42
    %44 = vst [vmem:[#allocation7] sm:$0xff] %v43
    // Predicated region
    $region18: #{tpu_custom_call.1} parent=1 // pred_check
      _
    $region19: #{tpu_custom_call.1} parent=1 // pred_check_branch
      %46 = sbr.rel (0) target = $region21
    $region20: #{tpu_custom_call.1} parent=1 // pred_region
      %s48 = ssub.s32 128, 32
      %49 = vsyncadd [#allocation4], %s48
      %s50 = sshll.u32 [#allocation7], 4
      %s51 = int_to_ptr.vmem [resolvable:$true] %s50
      %56 = dma.vmem_to_hbm [thread:$0]  %s51, 32, %s2, [#allocation4], 32, 32, 2
    $region21: #{tpu_custom_call.1} parent=1 // pred_fallthru
      _
    // Predicated region
    $region22: #{tpu_custom_call.1} parent=1 // pred_check
      _
    $region23: #{tpu_custom_call.1} parent=1 // pred_check_branch
      %58 = sbr.rel (0) target = $region25
    $region24: #{tpu_custom_call.1} parent=1 // pred_region
      %59 = dma.done [#allocation4], 128
    $region25: #{tpu_custom_call.1} parent=1 // pred_fallthru
      _
    %60 = vsyncpa [#allocation3], 1
    %61 = vsyncpa [#allocation4], 1
    %62 = vsyncpa [#allocation5], 1

</llo_original>
